<compile_context>
chip_gen: v6e
topology: v6e:2x2x1
jax: 0.10.0
libtpu: 0.0.40
codegen_flags: <defaults>
</compile_context>

<pallas_src>
import functools
import math

import jax
import jax.numpy as jnp
from jax.experimental import pallas as pl
from jax.experimental.pallas import tpu as pltpu

E_MARGIN = math.log(1000) / 2 - 1     # default e_margin from EATA.__init__
D_MARGIN = 0.05                       # default d_margin
NEG_INF = -1e30                       # bias for padded class lanes -> softmax prob == 0


def _eata_kernel(*refs, has_probs, e_margin, d_margin, n_valid, f_valid,
                 tile_n, tile_f, mask_f):
    if has_probs:
        x_ref, w_ref, b_ref, cmp_ref, logits_ref, stats_ref, psum_ref, acc_ref = refs
    else:
        x_ref, w_ref, b_ref, logits_ref, stats_ref, psum_ref, acc_ref = refs
        cmp_ref = None

    i = pl.program_id(0)              # batch tile
    k = pl.program_id(1)              # feature (contraction) tile
    nk = pl.num_programs(1)
    kp = logits_ref.shape[-1]

    @pl.when(k == 0)
    def _():
        acc_ref[...] = jnp.zeros_like(acc_ref)

    # ---- model forward: stream f32 x, cast to bf16 in-register, f32 MXU accumulation ----
    xb = x_ref[...]
    if mask_f:
        # last F block may read past the true feature dim: zero those columns so
        # garbage * (zero-padded W rows) cannot inject NaN into the accumulator
        col = jax.lax.broadcasted_iota(jnp.int32, (1, tile_f), 1) + k * tile_f
        xb = jnp.where(col < f_valid, xb, 0.0)
    acc_ref[...] += jnp.dot(xb.astype(jnp.bfloat16), w_ref[...],
                            preferred_element_type=jnp.float32)

    # ---- epilogue: only on the last contraction step ----
    @pl.when(k == nk - 1)
    def _():
        logits = acc_ref[...] + b_ref[...]                              # (tile_n, KP) f32
        logits_ref[...] = logits

        # rows past the true batch size (partial boundary block) must not contribute
        row = jax.lax.broadcasted_iota(jnp.int32, (tile_n, 1), 0) + i * tile_n
        valid = row < n_valid                                           # (tile_n, 1) bool

        # stable softmax + entropy (padded class lanes carry bias = -1e30 -> prob 0)
        m = jnp.max(logits, axis=1, keepdims=True)
        z = logits - m
        ez = jnp.exp(z)
        denom = jnp.sum(ez, axis=1, keepdims=True)
        sm = ez / denom                                                 # softmax (tile_n, KP)
        # H = -sum(p * log p) = log(denom) - sum(p * z)   (since sum(p) = 1)
        ent = jnp.log(denom) - jnp.sum(sm * z, axis=1, keepdims=True)   # (tile_n, 1)

        # filter 1: reliable samples (NaN entropy from garbage rows compares False)
        m1 = jnp.logical_and(valid, ent < e_margin)
        count1 = jnp.sum(jnp.where(m1, 1.0, 0.0))

        # filter 2: non-redundant samples (cosine vs moving-average probs)
        if has_probs:
            cmp = cmp_ref[...]                                          # (1, KP), zero padded
            dotp = jnp.sum(sm * cmp, axis=1, keepdims=True)
            # match torch F.cosine_similarity(eps=1e-8): each norm clamped individually
            inv_nsm = jax.lax.rsqrt(
                jnp.maximum(jnp.sum(sm * sm, axis=1, keepdims=True), 1e-16))
            inv_ncmp = jax.lax.rsqrt(
                jnp.maximum(jnp.sum(cmp * cmp, axis=1, keepdims=True), 1e-16))
            cos = dotp * inv_nsm * inv_ncmp
            sel = jnp.logical_and(m1, jnp.abs(cos) < d_margin)
        else:
            # ids2 = where(ids1[0] > -0.1) keeps every filter-1 sample
            sel = m1
        count2 = jnp.sum(jnp.where(sel, 1.0, 0.0))

        # entropy re-weighting: coeff = 1 / exp(ent - e_margin); boolean select (not mul)
        # so NaN entropy on invalid/garbage rows can never poison the partial sums
        sum_weighted = jnp.sum(jnp.where(sel, ent * jnp.exp(e_margin - ent), 0.0))

        # per-tile lane-dense partial outputs
        psum_ref[...] = jnp.sum(jnp.where(sel, sm, 0.0), axis=0,
                                keepdims=True).reshape(1, 1, kp)

        lane = jax.lax.broadcasted_iota(jnp.int32, (1, 1, 128), 2)
        stats_ref[...] = jnp.where(
            lane == 0, count1,
            jnp.where(lane == 1, count2,
                      jnp.where(lane == 2, sum_weighted, 0.0)))


def _vmem_capacity_bytes():
    """Physical VMEM of the local TPU generation (64 MiB fallback = v7x-safe)."""
    try:
        cap = int(pltpu.get_tpu_info().vmem_capacity_bytes)
        if cap > 0:
            return cap
    except Exception:
        pass
    return 64 * 1024 * 1024


def _pick_tiles(n, f, kp, vmem_cap):
    """Pick (tile_n, tile_f) so streamed double-buffered blocks fit the generation's VMEM.

    - tile_n is capped so the batch grid has >= 2 steps when the batch allows it
      (lets v7x's second TensorCore participate via the "parallel" axis).
    - tile_f is a multiple of 128 (or == F when F fits resident), so large-F cases
      stream W instead of holding it resident.
    """
    budget = max(24 << 20, int(vmem_cap * 0.65))
    n8 = ((max(int(n), 1) + 7) // 8) * 8
    if n8 >= 32:
        cap_n = ((n8 // 2 + 7) // 8) * 8          # guarantee >= 2 batch tiles
    else:
        cap_n = n8
    tile_n = min(1024, cap_n)

    while True:
        fixed = (3 * tile_n * kp * 4              # logits out (2 bufs) + f32 accumulator
                 + 4 * kp * 4                     # b + cmp (2 bufs each)
                 + 2 * (128 + kp) * 4             # stats/psum blocks
                 + (2 << 20))                     # slack
        avail = budget - fixed
        per_col = 2 * tile_n * 4 + 2 * kp * 2     # x f32 + W bf16, double buffered
        max_f = avail // per_col if avail > 0 else 0
        if max_f >= f:
            return tile_n, int(f)
        if max_f >= 128:
            return tile_n, int((max_f // 128) * 128)
        if tile_n > 8:
            tile_n = max(8, tile_n // 2)
        else:
            return 8, 128


def eata_forward(x_nchw, w, b, current_model_probs,
                 *, e_margin=E_MARGIN, d_margin=D_MARGIN):
    """One EATA forward step.

    Returns (outputs (N, K), stats (1, 3) = [loss, count_filter1, count_filter2],
             updated moving-average probs (1, K)).
    """
    N = int(x_nchw.shape[0])
    F = 1
    for d in x_nchw.shape[1:]:
        F *= int(d)
    K = int(w.shape[1])
    KP = ((K + 127) // 128) * 128                 # pad classes to full 128-lane vregs

    vmem_cap = _vmem_capacity_bytes()
    tile_n, tile_f = _pick_tiles(N, F, KP, vmem_cap)
    num_tiles_n = (N + tile_n - 1) // tile_n
    num_tiles_f = (F + tile_f - 1) // tile_f
    F_pad = num_tiles_f * tile_f
    mask_f = (F_pad != F)

    # x: reshape only (no cast, no pad copy) -> kernel streams f32 and casts per tile.
    x_flat = x_nchw.reshape(N, F)
    # W: padded (classes to KP lanes, features to F_pad with zero rows) + bf16 cast.
    w_p = jnp.zeros((F_pad, KP), jnp.bfloat16).at[:F, :K].set(w.astype(jnp.bfloat16))
    b_p = jnp.full((1, KP), NEG_INF, jnp.float32).at[0, :K].set(
        b.reshape(-1).astype(jnp.float32))

    has_probs = current_model_probs is not None

    x_spec = pl.BlockSpec((tile_n, tile_f), lambda i, k: (i, k))
    w_spec = pl.BlockSpec((tile_f, KP), lambda i, k: (k, 0))
    vec_spec = pl.BlockSpec((1, KP), lambda i, k: (0, 0))

    inputs = [x_flat, w_p, b_p]
    in_specs = [x_spec, w_spec, vec_spec]
    cmp_p = None
    if has_probs:
        cmp_p = jnp.zeros((1, KP), jnp.float32).at[0, :K].set(
            jnp.asarray(current_model_probs).reshape(-1).astype(jnp.float32))
        inputs.append(cmp_p)
        in_specs.append(vec_spec)

    kernel = functools.partial(_eata_kernel, has_probs=has_probs,
                               e_margin=float(e_margin), d_margin=float(d_margin),
                               n_valid=N, f_valid=F,
                               tile_n=tile_n, tile_f=tile_f, mask_f=mask_f)

    vmem_bytes = (2 * tile_n * tile_f * 4          # x blocks (f32, double buffered)
                  + 2 * tile_f * KP * 2            # W blocks (bf16, double buffered)
                  + 4 * KP * 4                     # b + cmp
                  + 2 * tile_n * KP * 4            # logits output block
                  + 2 * (128 + KP) * 4             # stats / psum blocks
                  + tile_n * KP * 4)               # accumulator scratch
    vmem_limit = int(max(32 << 20,
                         min(vmem_bytes + (8 << 20), vmem_cap - (8 << 20))))

    cost = pl.CostEstimate(
        flops=2 * N * F * KP,
        transcendentals=N * (KP + 8),
        bytes_accessed=N * F * 4 + num_tiles_n * F_pad * KP * 2 + N * KP * 4)

    logits_p, pstats, ppsum = pl.pallas_call(
        kernel,
        grid=(num_tiles_n, num_tiles_f),
        out_shape=(
            jax.ShapeDtypeStruct((N, KP), jnp.float32),                  # logits (lane dense)
            jax.ShapeDtypeStruct((num_tiles_n, 1, 128), jnp.float32),    # [count1,count2,sum_w]
            jax.ShapeDtypeStruct((num_tiles_n, 1, KP), jnp.float32),     # selected softmax sum
        ),
        in_specs=in_specs,
        out_specs=(
            pl.BlockSpec((tile_n, KP), lambda i, k: (i, 0)),
            pl.BlockSpec((1, 1, 128), lambda i, k: (i, 0, 0)),
            pl.BlockSpec((1, 1, KP), lambda i, k: (i, 0, 0)),
        ),
        scratch_shapes=[pltpu.VMEM((tile_n, KP), jnp.float32)],
        compiler_params=pltpu.CompilerParams(
            dimension_semantics=("parallel", "arbitrary"),
            vmem_limit_bytes=vmem_limit),
        cost_estimate=cost,
    )(*inputs)

    # ---- tiny JAX epilogue: reduce the per-tile partials ----
    outputs = logits_p[:, :K]
    count1 = jnp.sum(pstats[:, 0, 0])
    count2 = jnp.sum(pstats[:, 0, 1])
    sum_w = jnp.sum(pstats[:, 0, 2])
    loss = sum_w / count2                       # NaN when empty (matches torch.mean of empty)

    new_mean = jnp.sum(ppsum[:, 0, :], axis=0, keepdims=True) / count2   # (1, KP)
    if has_probs:
        updated = jnp.where(count2 > 0, 0.9 * cmp_p + 0.1 * new_mean, cmp_p)
    else:
        # TODO(synk): original returns None when probs were None and no sample survives;
        #             zeros stand in since this path must return an array.
        updated = jnp.where(count2 > 0, new_mean, jnp.zeros_like(new_mean))
    updated = updated[:, :K]

    stats = jnp.stack([loss, count1, count2]).reshape(1, 3)
    return outputs, stats, updated


if __name__ == "__main__":
    # Small deterministic setup consistent with the module's forward contract.
    N, C, H, W = 8, 4, 16, 16
    K = 16                                    # number of classes of the wrapped model
    F = C * H * W

    key = jax.random.PRNGKey(0)
    kx, kw, kb = jax.random.split(key, 3)
    x = jax.random.normal(kx, (N, C, H, W), jnp.float32)
    w = jax.random.normal(kw, (F, K), jnp.float32) * 0.05   # deterministic linear "model"
    b = jax.random.normal(kb, (K,), jnp.float32) * 0.01

    # current_model_probs after at least one prior batch (deterministic uniform init).
    current_probs = jnp.full((K,), 1.0 / K, jnp.float32)

    # warm-start path (cosine filter active) and cold-start path (current_model_probs=None)
    outputs, stats, updated_probs = eata_forward(x, w, b, current_probs)
    outputs0, stats0, updated0 = eata_forward(x, w, b, None)
    jax.block_until_ready((outputs, stats, updated_probs, outputs0, stats0, updated0))

    assert outputs.shape == (N, K) and outputs0.shape == (N, K)
    assert stats.shape == (1, 3) and stats0.shape == (1, 3)
    assert updated_probs.shape == (1, K) and updated0.shape == (1, K)

    # sanity check of the fused forward against plain XLA with the same bf16 matmul inputs
    ref_logits = jnp.dot(x.reshape(N, F).astype(jnp.bfloat16),
                         w.astype(jnp.bfloat16),
                         preferred_element_type=jnp.float32) + b.reshape(1, K)
    assert jnp.allclose(outputs, ref_logits, rtol=1e-2, atol=1e-2)

    print("KERNEL_OK")
</pallas_src>

<mosaic_0001>
module attributes {stable_mosaic.version = 11 : i64} {
  func.func @_eata_kernel(%arg0: i32, %arg1: i32, %arg2: memref<8x1024xf32, #tpu.memory_space<vmem>>, %arg3: memref<1024x128xbf16, #tpu.memory_space<vmem>>, %arg4: memref<1x128xf32, #tpu.memory_space<vmem>>, %arg5: memref<1x128xf32, #tpu.memory_space<vmem>>, %arg6: memref<8x128xf32, #tpu.memory_space<vmem>>, %arg7: memref<1x1x128xf32, #tpu.memory_space<vmem>>, %arg8: memref<1x1x128xf32, #tpu.memory_space<vmem>>, %arg9: memref<8x128xf32, #tpu.memory_space<vmem>>) attributes {dimension_semantics = [#tpu.dimension_semantics<parallel>, #tpu.dimension_semantics<arbitrary>], iteration_bounds = array<i64: 1, 1>, scalar_prefetch = 0 : i64, scratch_operands = 1 : i64, tpu.core_type = #tpu.core_type<tc>, window_params = [{transform_indices = @transform_0, window_bounds = array<i64: 8, 1024>}, {transform_indices = @transform_1, window_bounds = array<i64: 1024, 128>}, {pipeline_mode = #tpu.pipeline_mode<synchronous>, transform_indices = @transform_2, window_bounds = array<i64: 1, 128>}, {pipeline_mode = #tpu.pipeline_mode<synchronous>, transform_indices = @transform_3, window_bounds = array<i64: 1, 128>}, {transform_indices = @transform_4, window_bounds = array<i64: 8, 128>}, {transform_indices = @transform_5, window_bounds = array<i64: 1, 1, 128>}, {transform_indices = @transform_6, window_bounds = array<i64: 1, 1, 128>}]} {
    %c0_i32 = arith.constant 0 : i32
    %0 = arith.cmpi eq, %arg1, %c0_i32 : i32
    %1 = arith.extui %0 : i1 to i32
    %c0_i32_0 = arith.constant 0 : i32
    %2 = arith.cmpi ne, %1, %c0_i32_0 : i32
    scf.if %2 {
      %cst_10 = arith.constant 0.000000e+00 : f32
      %13 = vector.broadcast %cst_10 : f32 to vector<8x128xf32>
      %c0_11 = arith.constant 0 : index
      %c0_12 = arith.constant 0 : index
      %14 = vector.load %arg9[%c0_11, %c0_12] : memref<8x128xf32, #tpu.memory_space<vmem>>, vector<8x128xf32>
      tpu.vector_store %arg9[%c0_11, %c0_12], %13 {strides = array<i32>} : memref<8x128xf32, #tpu.memory_space<vmem>>, vector<8x128xf32>,
    } else {
    }
    %c0 = arith.constant 0 : index
    %c0_1 = arith.constant 0 : index
    %3 = vector.load %arg2[%c0, %c0_1] : memref<8x1024xf32, #tpu.memory_space<vmem>>, vector<8x1024xf32>
    %c0_2 = arith.constant 0 : index
    %c0_3 = arith.constant 0 : index
    %4 = vector.load %arg9[%c0_2, %c0_3] : memref<8x128xf32, #tpu.memory_space<vmem>>, vector<8x128xf32>
    %5 = arith.truncf %3 : vector<8x1024xf32> to vector<8x1024xbf16>
    %c0_4 = arith.constant 0 : index
    %c0_5 = arith.constant 0 : index
    %6 = vector.load %arg3[%c0_4, %c0_5] : memref<1024x128xbf16, #tpu.memory_space<vmem>>, vector<1024x128xbf16>
    %cst = arith.constant dense<0.000000e+00> : vector<8x128xf32>
    %7 = tpu.matmul %5, %6, %cst {dimension_numbers = #tpu.dot_dimension_numbers<[1], [0], [0], [1], [0, 0, 1, 1], [], []>} : vector<8x1024xbf16>, vector<1024x128xbf16>, vector<8x128xf32> -> vector<8x128xf32>
    %8 = arith.addf %4, %7 : vector<8x128xf32>
    %c0_6 = arith.constant 0 : index
    %c0_7 = arith.constant 0 : index
    %9 = vector.load %arg9[%c0_6, %c0_7] : memref<8x128xf32, #tpu.memory_space<vmem>>, vector<8x128xf32>
    tpu.vector_store %arg9[%c0_6, %c0_7], %8 {strides = array<i32>} : memref<8x128xf32, #tpu.memory_space<vmem>>, vector<8x128xf32>,
    %c0_i32_8 = arith.constant 0 : i32
    %10 = arith.cmpi eq, %arg1, %c0_i32_8 : i32
    %11 = arith.extui %10 : i1 to i32
    %c0_i32_9 = arith.constant 0 : i32
    %12 = arith.cmpi ne, %11, %c0_i32_9 : i32
    scf.if %12 {
      %c0_10 = arith.constant 0 : index
      %c0_11 = arith.constant 0 : index
      %13 = vector.load %arg9[%c0_10, %c0_11] : memref<8x128xf32, #tpu.memory_space<vmem>>, vector<8x128xf32>
      %c0_12 = arith.constant 0 : index
      %c0_13 = arith.constant 0 : index
      %14 = vector.load %arg4[%c0_12, %c0_13] : memref<1x128xf32, #tpu.memory_space<vmem>>, vector<1x128xf32>
      %15 = vector.broadcast %14 : vector<1x128xf32> to vector<8x128xf32>
      %16 = arith.addf %13, %15 : vector<8x128xf32>
      %c0_14 = arith.constant 0 : index
      %c0_15 = arith.constant 0 : index
      %17 = vector.load %arg6[%c0_14, %c0_15] : memref<8x128xf32, #tpu.memory_space<vmem>>, vector<8x128xf32>
      tpu.vector_store %arg6[%c0_14, %c0_15], %16 {strides = array<i32>} : memref<8x128xf32, #tpu.memory_space<vmem>>, vector<8x128xf32>,
      %18 = tpu.iota {dimensions = array<i32: 0>} : vector<8x1xi32>
      %c8_i32 = arith.constant 8 : i32
      %19 = arith.muli %arg0, %c8_i32 : i32
      %20 = vector.broadcast %19 : i32 to vector<8x1xi32>
      %21 = arith.addi %18, %20 : vector<8x1xi32>
      %c8_i32_16 = arith.constant 8 : i32
      %22 = vector.broadcast %c8_i32_16 : i32 to vector<8x1xi32>
      %23 = arith.cmpi slt, %21, %22 : vector<8x1xi32>
      %cst_17 = arith.constant dense<0xFF800000> : vector<8xf32>
      %24 = vector.multi_reduction <maximumf>, %16, %cst_17 [1] : vector<8x128xf32> to vector<8xf32>
      %25 = vector.shape_cast %24 : vector<8xf32> to vector<8x1xf32>
      %26 = vector.broadcast %25 : vector<8x1xf32> to vector<8x128xf32>
      %27 = arith.subf %16, %26 : vector<8x128xf32>
      %28 = math.exp %27 : vector<8x128xf32>
      %cst_18 = arith.constant dense<0.000000e+00> : vector<8xf32>
      %29 = vector.multi_reduction <add>, %28, %cst_18 [1] : vector<8x128xf32> to vector<8xf32>
      %30 = vector.shape_cast %29 : vector<8xf32> to vector<8x1xf32>
      %31 = vector.broadcast %30 : vector<8x1xf32> to vector<8x128xf32>
      %32 = arith.divf %28, %31 : vector<8x128xf32>
      %33 = math.log %30 : vector<8x1xf32>
      %34 = arith.mulf %32, %27 : vector<8x128xf32>
      %cst_19 = arith.constant dense<0.000000e+00> : vector<8xf32>
      %35 = vector.multi_reduction <add>, %34, %cst_19 [1] : vector<8x128xf32> to vector<8xf32>
      %36 = vector.shape_cast %35 : vector<8xf32> to vector<8x1xf32>
      %37 = arith.subf %33, %36 : vector<8x1xf32>
      %cst_20 = arith.constant 2.45387769 : f32
      %38 = vector.broadcast %cst_20 : f32 to vector<8x1xf32>
      %39 = arith.cmpf olt, %37, %38 : vector<8x1xf32>
      %40 = arith.andi %23, %39 : vector<8x1xi1>
      %cst_21 = arith.constant 1.000000e+00 : f32
      %cst_22 = arith.constant 0.000000e+00 : f32
      %41 = vector.broadcast %cst_21 : f32 to vector<8x1xf32>
      %42 = vector.broadcast %cst_22 : f32 to vector<8x1xf32>
      %43 = arith.select %40, %41, %42 : vector<8x1xi1>, vector<8x1xf32>
      %44 = vector.shape_cast %43 : vector<8x1xf32> to vector<1x8x1xf32>
      %cst_23 = arith.constant dense<0.000000e+00> : vector<1xf32>
      %45 = vector.multi_reduction <add>, %44, %cst_23 [1, 2] : vector<1x8x1xf32> to vector<1xf32>
      %46 = vector.shape_cast %45 : vector<1xf32> to vector<1x1x1xf32>
      %47 = vector.extract %46[0, 0, 0] : f32 from vector<1x1x1xf32>
      %c0_24 = arith.constant 0 : index
      %c0_25 = arith.constant 0 : index
      %48 = vector.load %arg5[%c0_24, %c0_25] : memref<1x128xf32, #tpu.memory_space<vmem>>, vector<1x128xf32>
      %49 = vector.broadcast %48 : vector<1x128xf32> to vector<8x128xf32>
      %50 = arith.mulf %32, %49 : vector<8x128xf32>
      %cst_26 = arith.constant dense<0.000000e+00> : vector<8xf32>
      %51 = vector.multi_reduction <add>, %50, %cst_26 [1] : vector<8x128xf32> to vector<8xf32>
      %52 = vector.shape_cast %51 : vector<8xf32> to vector<8x1xf32>
      %53 = arith.mulf %32, %32 : vector<8x128xf32>
      %cst_27 = arith.constant dense<0.000000e+00> : vector<8xf32>
      %54 = vector.multi_reduction <add>, %53, %cst_27 [1] : vector<8x128xf32> to vector<8xf32>
      %55 = vector.shape_cast %54 : vector<8xf32> to vector<8x1xf32>
      %cst_28 = arith.constant 1.000000e-16 : f32
      %56 = vector.broadcast %cst_28 : f32 to vector<8x1xf32>
      %57 = arith.maximumf %55, %56 : vector<8x1xf32>
      %58 = math.rsqrt %57 : vector<8x1xf32>
      %59 = arith.mulf %48, %48 : vector<1x128xf32>
      %cst_29 = arith.constant dense<0.000000e+00> : vector<1xf32>
      %60 = vector.multi_reduction <add>, %59, %cst_29 [1] : vector<1x128xf32> to vector<1xf32>
      %61 = vector.shape_cast %60 : vector<1xf32> to vector<1x1xf32>
      %cst_30 = arith.constant 1.000000e-16 : f32
      %62 = vector.broadcast %cst_30 : f32 to vector<1x1xf32>
      %63 = arith.maximumf %61, %62 : vector<1x1xf32>
      %64 = math.rsqrt %63 : vector<1x1xf32>
      %65 = arith.mulf %52, %58 : vector<8x1xf32>
      %66 = vector.broadcast %64 : vector<1x1xf32> to vector<8x1xf32>
      %67 = arith.mulf %65, %66 : vector<8x1xf32>
      %68 = math.absf %67 : vector<8x1xf32>
      %cst_31 = arith.constant 5.000000e-02 : f32
      %69 = vector.broadcast %cst_31 : f32 to vector<8x1xf32>
      %70 = arith.cmpf olt, %68, %69 : vector<8x1xf32>
      %71 = arith.andi %40, %70 : vector<8x1xi1>
      %cst_32 = arith.constant 1.000000e+00 : f32
      %cst_33 = arith.constant 0.000000e+00 : f32
      %72 = vector.broadcast %cst_32 : f32 to vector<8x1xf32>
      %73 = vector.broadcast %cst_33 : f32 to vector<8x1xf32>
      %74 = arith.select %71, %72, %73 : vector<8x1xi1>, vector<8x1xf32>
      %75 = vector.shape_cast %74 : vector<8x1xf32> to vector<1x8x1xf32>
      %cst_34 = arith.constant dense<0.000000e+00> : vector<1xf32>
      %76 = vector.multi_reduction <add>, %75, %cst_34 [1, 2] : vector<1x8x1xf32> to vector<1xf32>
      %77 = vector.shape_cast %76 : vector<1xf32> to vector<1x1x1xf32>
      %78 = vector.extract %77[0, 0, 0] : f32 from vector<1x1x1xf32>
      %cst_35 = arith.constant 2.45387769 : f32
      %79 = vector.broadcast %cst_35 : f32 to vector<8x1xf32>
      %80 = arith.subf %79, %37 : vector<8x1xf32>
      %81 = math.exp %80 : vector<8x1xf32>
      %82 = arith.mulf %37, %81 : vector<8x1xf32>
      %cst_36 = arith.constant 0.000000e+00 : f32
      %83 = vector.broadcast %cst_36 : f32 to vector<8x1xf32>
      %84 = arith.select %71, %82, %83 : vector<8x1xi1>, vector<8x1xf32>
      %85 = vector.shape_cast %84 : vector<8x1xf32> to vector<1x8x1xf32>
      %cst_37 = arith.constant dense<0.000000e+00> : vector<1xf32>
      %86 = vector.multi_reduction <add>, %85, %cst_37 [1, 2] : vector<1x8x1xf32> to vector<1xf32>
      %87 = vector.shape_cast %86 : vector<1xf32> to vector<1x1x1xf32>
      %88 = vector.extract %87[0, 0, 0] : f32 from vector<1x1x1xf32>
      %cst_38 = arith.constant 0.000000e+00 : f32
      %89 = vector.shape_cast %71 : vector<8x1xi1> to vector<8x1xi1>
      %90 = vector.broadcast %89 : vector<8x1xi1> to vector<8x128xi1>
      %91 = vector.broadcast %cst_38 : f32 to vector<8x128xf32>
      %92 = arith.select %90, %32, %91 : vector<8x128xi1>, vector<8x128xf32>
      %cst_39 = arith.constant dense<0.000000e+00> : vector<128xf32>
      %93 = vector.multi_reduction <add>, %92, %cst_39 [0] : vector<8x128xf32> to vector<128xf32>
      %94 = vector.shape_cast %93 : vector<128xf32> to vector<1x128xf32>
      %95 = vector.shape_cast %94 : vector<1x128xf32> to vector<1x1x128xf32>
      %c0_40 = arith.constant 0 : index
      %c0_41 = arith.constant 0 : index
      %c0_42 = arith.constant 0 : index
      %96 = vector.load %arg8[%c0_40, %c0_41, %c0_42] : memref<1x1x128xf32, #tpu.memory_space<vmem>>, vector<1x1x128xf32>
      tpu.vector_store %arg8[%c0_40, %c0_41, %c0_42], %95 {strides = array<i32>} : memref<1x1x128xf32, #tpu.memory_space<vmem>>, vector<1x1x128xf32>,
      %97 = tpu.iota {dimensions = array<i32: 2>} : vector<1x1x128xi32>
      %c0_i32_43 = arith.constant 0 : i32
      %98 = vector.broadcast %c0_i32_43 : i32 to vector<1x1x128xi32>
      %99 = arith.cmpi eq, %97, %98 : vector<1x1x128xi32>
      %c1_i32 = arith.constant 1 : i32
      %100 = vector.broadcast %c1_i32 : i32 to vector<1x1x128xi32>
      %101 = arith.cmpi eq, %97, %100 : vector<1x1x128xi32>
      %c2_i32 = arith.constant 2 : i32
      %102 = vector.broadcast %c2_i32 : i32 to vector<1x1x128xi32>
      %103 = arith.cmpi eq, %97, %102 : vector<1x1x128xi32>
      %cst_44 = arith.constant 0.000000e+00 : f32
      %104 = vector.broadcast %88 : f32 to vector<1x1x128xf32>
      %105 = vector.broadcast %cst_44 : f32 to vector<1x1x128xf32>
      %106 = arith.select %103, %104, %105 : vector<1x1x128xi1>, vector<1x1x128xf32>
      %107 = vector.broadcast %78 : f32 to vector<1x1x128xf32>
      %108 = arith.select %101, %107, %106 : vector<1x1x128xi1>, vector<1x1x128xf32>
      %109 = vector.broadcast %47 : f32 to vector<1x1x128xf32>
      %110 = arith.select %99, %109, %108 : vector<1x1x128xi1>, vector<1x1x128xf32>
      %c0_45 = arith.constant 0 : index
      %c0_46 = arith.constant 0 : index
      %c0_47 = arith.constant 0 : index
      %111 = vector.load %arg7[%c0_45, %c0_46, %c0_47] : memref<1x1x128xf32, #tpu.memory_space<vmem>>, vector<1x1x128xf32>
      tpu.vector_store %arg7[%c0_45, %c0_46, %c0_47], %110 {strides = array<i32>} : memref<1x1x128xf32, #tpu.memory_space<vmem>>, vector<1x1x128xf32>,
    } else {
    }
    return
  }
  func.func @transform_0(%arg0: i32, %arg1: i32) -> (i32, i32) {
    %c0_i32 = arith.constant 0 : i32
    return %arg0, %arg1 : i32, i32
  }
  func.func @transform_1(%arg0: i32, %arg1: i32) -> (i32, i32) {
    %c0_i32 = arith.constant 0 : i32
    %c0_i32_0 = arith.constant 0 : i32
    return %arg1, %c0_i32 : i32, i32
  }
  func.func @transform_2(%arg0: i32, %arg1: i32) -> (i32, i32) {
    %c0_i32 = arith.constant 0 : i32
    %c0_i32_0 = arith.constant 0 : i32
    %c0_i32_1 = arith.constant 0 : i32
    return %c0_i32, %c0_i32_0 : i32, i32
  }
  func.func @transform_3(%arg0: i32, %arg1: i32) -> (i32, i32) {
    %c0_i32 = arith.constant 0 : i32
    %c0_i32_0 = arith.constant 0 : i32
    %c0_i32_1 = arith.constant 0 : i32
    return %c0_i32, %c0_i32_0 : i32, i32
  }
  func.func @transform_4(%arg0: i32, %arg1: i32) -> (i32, i32) {
    %c0_i32 = arith.constant 0 : i32
    %c0_i32_0 = arith.constant 0 : i32
    return %arg0, %c0_i32 : i32, i32
  }
  func.func @transform_5(%arg0: i32, %arg1: i32) -> (i32, i32, i32) {
    %c0_i32 = arith.constant 0 : i32
    %c0_i32_0 = arith.constant 0 : i32
    %c0_i32_1 = arith.constant 0 : i32
    return %arg0, %c0_i32, %c0_i32_0 : i32, i32, i32
  }
  func.func @transform_6(%arg0: i32, %arg1: i32) -> (i32, i32, i32) {
    %c0_i32 = arith.constant 0 : i32
    %c0_i32_0 = arith.constant 0 : i32
    %c0_i32_1 = arith.constant 0 : i32
    return %arg0, %c0_i32, %c0_i32_0 : i32, i32, i32
  }
}

</mosaic_0001>

<llo_original>
// kernel: tpu_custom_call.1
$region0: #{tpu_custom_call.1}
  #allocation0 [shape = 'u32[]', space=smem, size = 0x4, offset = 0x4, fixed_abs, tag = 'smem constant byte address 0x4 - core index']
  #allocation1 [shape = 'u32[144,128]{1,0:T(1,128)}', space=vmem, size = 0x12000, scoped, tag = 'internal scratch']
  #allocation2 [shape = 'f32[8,128]{1,0:T(8,128)}', space=vmem, size = 0x1000, scoped, tag = 'scratch operand']
  %s0 = inlined_call_operand.hbm [shape: f32[8,1024], index: 0, kind: input, shape index: {}]
  %s1 = inlined_call_operand.hbm [shape: bf16[1024,128], index: 1, kind: input, shape index: {}]
  %s2 = inlined_call_operand.vmem [shape: f32[1,128], index: 2, kind: input, shape index: {}]
  %s3 = inlined_call_operand.vmem [shape: f32[1,128], index: 3, kind: input, shape index: {}]
  %s4 = inlined_call_operand.hbm [shape: f32[8,128], index: 4, kind: output, shape index: {0}]
  %s5 = inlined_call_operand.hbm [shape: f32[1,1,128], index: 5, kind: output, shape index: {1}]
  %s6 = inlined_call_operand.hbm [shape: f32[1,1,128], index: 6, kind: output, shape index: {2}]
  %7 = xla_tuple %s4, %s5, %s6
  %s8 = sld [smem:[#allocation0]]
  $region58: #{tpu_custom_call.1} parent=0
    _
  %s10 = ssub.s32 1, %s8
  %s11 = scalar_select 0, %s10, %s8
  $region1: #{tpu_custom_call.1} parent=0
    #allocation3 [shape = 'u8[32768]{0}', space=vmem, size = 0x8000, scoped, tag = 'input window, operand 0, single buffered']
    #allocation4 [shape = 's32[1]{0}', space=sflag, size = 0x4, scoped, tag = 'scoped memory for tpu_custom_call.1']
    #allocation5 [shape = 's32[1]{0}', space=sflag, size = 0x4, scoped, tag = 'scoped memory for tpu_custom_call.1']
    #allocation6 [shape = 'u8[262144]{0}', space=vmem, size = 0x40000, scoped, tag = 'input window, operand 1, single buffered']
    #allocation7 [shape = 's32[1]{0}', space=sflag, size = 0x4, scoped, tag = 'scoped memory for tpu_custom_call.1']
    #allocation8 [shape = 'u8[4096]{0}', space=vmem, size = 0x1000, scoped, tag = 'output window, operand 0, single buffered']
    #allocation9 [shape = 'u8[512]{0}', space=vmem, size = 0x400, scoped, tag = 'output window, operand 1, single buffered']
    #allocation10 [shape = 's32[1]{0}', space=sflag, size = 0x4, scoped, tag = 'scoped memory for tpu_custom_call.1']
    #allocation11 [shape = 'u8[512]{0}', space=vmem, size = 0x400, scoped, tag = 'output window, operand 2, single buffered']
    %12 = vsyncpa [#allocation4], 0
    %13 = vsyncpa [#allocation7], 0
    %14 = vsyncpa [#allocation5], 0
    %15 = vsyncpa [#allocation10], 0
    // Predicated region
    $region2: #{tpu_custom_call.1} parent=1 // pred_check
      _
    $region3: #{tpu_custom_call.1} parent=1 // pred_check_branch
      %17 = sbr.rel (0) target = $region5
    $region4: #{tpu_custom_call.1} parent=1 // pred_region
      %s19 = ssub.s32 1024, 1024
      %20 = vsyncadd [#allocation4], %s19
      %s22 = sshll.u32 [#allocation3], 4
      %s23 = int_to_ptr.vmem [resolvable:$true] %s22
      %25 = dma.hbm_to_vmem [thread:$0]  %s0, 1024, %s23, [#allocation4]
    $region5: #{tpu_custom_call.1} parent=1 // pred_fallthru
      _
    // Predicated region
    $region6: #{tpu_custom_call.1} parent=1 // pred_check
      _
    $region7: #{tpu_custom_call.1} parent=1 // pred_check_branch
      %27 = sbr.rel (0) target = $region9
    $region8: #{tpu_custom_call.1} parent=1 // pred_region
      %s29 = ssub.s32 8192, 8192
      %30 = vsyncadd [#allocation7], %s29
      %s31 = sshll.u32 [#allocation6], 4
      %s32 = int_to_ptr.vmem [resolvable:$true] %s31
      %37 = dma.hbm_to_vmem [thread:$0]  %s1, 8192, %s32, [#allocation7], 64, 64, 4
    $region9: #{tpu_custom_call.1} parent=1 // pred_fallthru
      _
    // Predicated region
    $region10: #{tpu_custom_call.1} parent=1 // pred_check
      _
    $region11: #{tpu_custom_call.1} parent=1 // pred_check_branch
      %39 = sbr.rel (0) target = $region13
    $region12: #{tpu_custom_call.1} parent=1 // pred_region
      _
    $region13: #{tpu_custom_call.1} parent=1 // pred_fallthru
      _
    // Predicated region
    $region14: #{tpu_custom_call.1} parent=1 // pred_check
      _
    $region15: #{tpu_custom_call.1} parent=1 // pred_check_branch
      %41 = sbr.rel (0) target = $region17
    $region16: #{tpu_custom_call.1} parent=1 // pred_region
      _
    $region17: #{tpu_custom_call.1} parent=1 // pred_fallthru
      _
    // Predicated region
    $region18: #{tpu_custom_call.1} parent=1 // pred_check
      _
    $region19: #{tpu_custom_call.1} parent=1 // pred_check_branch
      %43 = sbr.rel (0) target = $region21
    $region20: #{tpu_custom_call.1} parent=1 // pred_region
      %44 = dma.done [#allocation4], 1024
    $region21: #{tpu_custom_call.1} parent=1 // pred_fallthru
      _
    // Predicated region
    $region22: #{tpu_custom_call.1} parent=1 // pred_check
      _
    $region23: #{tpu_custom_call.1} parent=1 // pred_check_branch
      %46 = sbr.rel (0) target = $region25
    $region24: #{tpu_custom_call.1} parent=1 // pred_region
      %47 = dma.done [#allocation7], 8192
    $region25: #{tpu_custom_call.1} parent=1 // pred_fallthru
      _
    %p49 = scmp.eq.s32.totalorder 0, 0
    // Predicated region
    $region26: #{tpu_custom_call.1} parent=1 // pred_check
      %p50 = pneg %p49
    $region27: #{tpu_custom_call.1} parent=1 // pred_check_branch
      %52 = sbr.rel (%p50) target = $region29
    $region28: #{tpu_custom_call.1} parent=1 // pred_region
      %53 = vst [vmem:[#allocation2] sm:$0xff] 0.0
    $region29: #{tpu_custom_call.1} parent=1 // pred_fallthru
      _
    %v54 = vld [vmem:[#allocation3] sm:$0xff]
    %v55 = vld [vmem:[#allocation3 + $0x8] sm:$0xff]
    %v56 = vld [vmem:[#allocation3 + $0x10] sm:$0xff]
    %v57 = vld [vmem:[#allocation3 + $0x18] sm:$0xff]
    %v58 = vld [vmem:[#allocation3 + $0x20] sm:$0xff]
    %v59 = vld [vmem:[#allocation3 + $0x28] sm:$0xff]
    %v60 = vld [vmem:[#allocation3 + $0x30] sm:$0xff]
    %v61 = vld [vmem:[#allocation3 + $0x38] sm:$0xff]
    %v62 = vld [vmem:[#allocation2] sm:$0xff]
    %v63 = vpack.c.bf16 %v54, %v54
    %v64 = vpack.c.bf16 %v55, %v55
    %v65 = vpack.c.bf16 %v56, %v56
    %v66 = vpack.c.bf16 %v57, %v57
    %v67 = vpack.c.bf16 %v58, %v58
    %v68 = vpack.c.bf16 %v59, %v59
    %v69 = vpack.c.bf16 %v60, %v60
    %v70 = vpack.c.bf16 %v61, %v61
    %v71 = vld [vmem:[#allocation6] sm:$0xf]
    %v72 = vld [vmem:[#allocation6 + $0x4] sm:$0xf]
    %v73 = vld [vmem:[#allocation6 + $0x8] sm:$0xf]
    %v74 = vld [vmem:[#allocation6 + $0xc] sm:$0xf]
    %v75 = vld [vmem:[#allocation6 + $0x10] sm:$0xf]
    %v76 = vld [vmem:[#allocation6 + $0x14] sm:$0xf]
    %v77 = vld [vmem:[#allocation6 + $0x18] sm:$0xf]
    %v78 = vld [vmem:[#allocation6 + $0x1c] sm:$0xf]
    %v79 = vld [vmem:[#allocation6 + $0x20] sm:$0xf]
    %v80 = vld [vmem:[#allocation6 + $0x24] sm:$0xf]
    %v81 = vld [vmem:[#allocation6 + $0x28] sm:$0xf]
    %v82 = vld [vmem:[#allocation6 + $0x2c] sm:$0xf]
    %v83 = vld [vmem:[#allocation6 + $0x30] sm:$0xf]
    %v84 = vld [vmem:[#allocation6 + $0x34] sm:$0xf]
    %v85 = vld [vmem:[#allocation6 + $0x38] sm:$0xf]
    %v86 = vld [vmem:[#allocation6 + $0x3c] sm:$0xf]
    %v87 = vld [vmem:[#allocation6 + $0x40] sm:$0xf]
    %v88 = vld [vmem:[#allocation6 + $0x44] sm:$0xf]
    %v89 = vld [vmem:[#allocation6 + $0x48] sm:$0xf]
    %v90 = vld [vmem:[#allocation6 + $0x4c] sm:$0xf]
    %v91 = vld [vmem:[#allocation6 + $0x50] sm:$0xf]
    %v92 = vld [vmem:[#allocation6 + $0x54] sm:$0xf]
    %v93 = vld [vmem:[#allocation6 + $0x58] sm:$0xf]
    %v94 = vld [vmem:[#allocation6 + $0x5c] sm:$0xf]
    %v95 = vld [vmem:[#allocation6 + $0x60] sm:$0xf]
    %v96 = vld [vmem:[#allocation6 + $0x64] sm:$0xf]
    %v97 = vld [vmem:[#allocation6 + $0x68] sm:$0xf]
    %v98 = vld [vmem:[#allocation6 + $0x6c] sm:$0xf]
    %v99 = vld [vmem:[#allocation6 + $0x70] sm:$0xf]
    %v100 = vld [vmem:[#allocation6 + $0x74] sm:$0xf]
    %v101 = vld [vmem:[#allocation6 + $0x78] sm:$0xf]
    %v102 = vld [vmem:[#allocation6 + $0x7c] sm:$0xf]
    %v103 = vld [vmem:[#allocation6 + $0x80] sm:$0xf]
    %v104 = vld [vmem:[#allocation6 + $0x84] sm:$0xf]
    %v105 = vld [vmem:[#allocation6 + $0x88] sm:$0xf]
    %v106 = vld [vmem:[#allocation6 + $0x8c] sm:$0xf]
    %v107 = vld [vmem:[#allocation6 + $0x90] sm:$0xf]
    %v108 = vld [vmem:[#allocation6 + $0x94] sm:$0xf]
    %v109 = vld [vmem:[#allocation6 + $0x98] sm:$0xf]
    %v110 = vld [vmem:[#allocation6 + $0x9c] sm:$0xf]
    %v111 = vld [vmem:[#allocation6 + $0xa0] sm:$0xf]
    %v112 = vld [vmem:[#allocation6 + $0xa4] sm:$0xf]
    %v113 = vld [vmem:[#allocation6 + $0xa8] sm:$0xf]
    %v114 = vld [vmem:[#allocation6 + $0xac] sm:$0xf]
    %v115 = vld [vmem:[#allocation6 + $0xb0] sm:$0xf]
    %v116 = vld [vmem:[#allocation6 + $0xb4] sm:$0xf]
    %v117 = vld [vmem:[#allocation6 + $0xb8] sm:$0xf]
    %v118 = vld [vmem:[#allocation6 + $0xbc] sm:$0xf]
    %v119 = vld [vmem:[#allocation6 + $0xc0] sm:$0xf]
    %v120 = vld [vmem:[#allocation6 + $0xc4] sm:$0xf]
    %v121 = vld [vmem:[#allocation6 + $0xc8] sm:$0xf]
    %v122 = vld [vmem:[#allocation6 + $0xcc] sm:$0xf]
    %v123 = vld [vmem:[#allocation6 + $0xd0] sm:$0xf]
    %v124 = vld [vmem:[#allocation6 + $0xd4] sm:$0xf]
    %v125 = vld [vmem:[#allocation6 + $0xd8] sm:$0xf]
    %v126 = vld [vmem:[#allocation6 + $0xdc] sm:$0xf]
    %v127 = vld [vmem:[#allocation6 + $0xe0] sm:$0xf]
    %v128 = vld [vmem:[#allocation6 + $0xe4] sm:$0xf]
    %v129 = vld [vmem:[#allocation6 + $0xe8] sm:$0xf]
    %v130 = vld [vmem:[#allocation6 + $0xec] sm:$0xf]
    %v131 = vld [vmem:[#allocation6 + $0xf0] sm:$0xf]
    %v132 = vld [vmem:[#allocation6 + $0xf4] sm:$0xf]
    %v133 = vld [vmem:[#allocation6 + $0xf8] sm:$0xf]
    %v134 = vld [vmem:[#allocation6 + $0xfc] sm:$0xf]
    %v135 = vld [vmem:[#allocation6 + $0x100] sm:$0xf]
    %v136 = vld [vmem:[#allocation6 + $0x104] sm:$0xf]
    %v137 = vld [vmem:[#allocation6 + $0x108] sm:$0xf]
    %v138 = vld [vmem:[#allocation6 + $0x10c] sm:$0xf]
    %v139 = vld [vmem:[#allocation6 + $0x110] sm:$0xf]
    %v140 = vld [vmem:[#allocation6 + $0x114] sm:$0xf]
    %v141 = vld [vmem:[#allocation6 + $0x118] sm:$0xf]
    %v142 = vld [vmem:[#allocation6 + $0x11c] sm:$0xf]
    %v143 = vld [vmem:[#allocation6 + $0x120] sm:$0xf]
    %v144 = vld [vmem:[#allocation6 + $0x124] sm:$0xf]
    %v145 = vld [vmem:[#allocation6 + $0x128] sm:$0xf]
    %v146 = vld [vmem:[#allocation6 + $0x12c] sm:$0xf]
    %v147 = vld [vmem:[#allocation6 + $0x130] sm:$0xf]
    %v148 = vld [vmem:[#allocation6 + $0x134] sm:$0xf]
    %v149 = vld [vmem:[#allocation6 + $0x138] sm:$0xf]
    %v150 = vld [vmem:[#allocation6 + $0x13c] sm:$0xf]
    %v151 = vld [vmem:[#allocation6 + $0x140] sm:$0xf]
    %v152 = vld [vmem:[#allocation6 + $0x144] sm:$0xf]
    %v153 = vld [vmem:[#allocation6 + $0x148] sm:$0xf]
    %v154 = vld [vmem:[#allocation6 + $0x14c] sm:$0xf]
    %v155 = vld [vmem:[#allocation6 + $0x150] sm:$0xf]
    %v156 = vld [vmem:[#allocation6 + $0x154] sm:$0xf]
    %v157 = vld [vmem:[#allocation6 + $0x158] sm:$0xf]
    %v158 = vld [vmem:[#allocation6 + $0x15c] sm:$0xf]
    %v159 = vld [vmem:[#allocation6 + $0x160] sm:$0xf]
    %v160 = vld [vmem:[#allocation6 + $0x164] sm:$0xf]
    %v161 = vld [vmem:[#allocation6 + $0x168] sm:$0xf]
    %v162 = vld [vmem:[#allocation6 + $0x16c] sm:$0xf]
    %v163 = vld [vmem:[#allocation6 + $0x170] sm:$0xf]
    %v164 = vld [vmem:[#allocation6 + $0x174] sm:$0xf]
    %v165 = vld [vmem:[#allocation6 + $0x178] sm:$0xf]
    %v166 = vld [vmem:[#allocation6 + $0x17c] sm:$0xf]
    %v167 = vld [vmem:[#allocation6 + $0x180] sm:$0xf]
    %v168 = vld [vmem:[#allocation6 + $0x184] sm:$0xf]
    %v169 = vld [vmem:[#allocation6 + $0x188] sm:$0xf]
    %v170 = vld [vmem:[#allocation6 + $0x18c] sm:$0xf]
    %v171 = vld [vmem:[#allocation6 + $0x190] sm:$0xf]
    %v172 = vld [vmem:[#allocation6 + $0x194] sm:$0xf]
    %v173 = vld [vmem:[#allocation6 + $0x198] sm:$0xf]
    %v174 = vld [vmem:[#allocation6 + $0x19c] sm:$0xf]
    %v175 = vld [vmem:[#allocation6 + $0x1a0] sm:$0xf]
    %v176 = vld [vmem:[#allocation6 + $0x1a4] sm:$0xf]
    %v177 = vld [vmem:[#allocation6 + $0x1a8] sm:$0xf]
    %v178 = vld [vmem:[#allocation6 + $0x1ac] sm:$0xf]
    %v179 = vld [vmem:[#allocation6 + $0x1b0] sm:$0xf]
    %v180 = vld [vmem:[#allocation6 + $0x1b4] sm:$0xf]
    %v181 = vld [vmem:[#allocation6 + $0x1b8] sm:$0xf]
    %v182 = vld [vmem:[#allocation6 + $0x1bc] sm:$0xf]
    %v183 = vld [vmem:[#allocation6 + $0x1c0] sm:$0xf]
    %v184 = vld [vmem:[#allocation6 + $0x1c4] sm:$0xf]
    %v185 = vld [vmem:[#allocation6 + $0x1c8] sm:$0xf]
    %v186 = vld [vmem:[#allocation6 + $0x1cc] sm:$0xf]
    %v187 = vld [vmem:[#allocation6 + $0x1d0] sm:$0xf]
    %v188 = vld [vmem:[#allocation6 + $0x1d4] sm:$0xf]
    %v189 = vld [vmem:[#allocation6 + $0x1d8] sm:$0xf]
    %v190 = vld [vmem:[#allocation6 + $0x1dc] sm:$0xf]
    %v191 = vld [vmem:[#allocation6 + $0x1e0] sm:$0xf]
    %v192 = vld [vmem:[#allocation6 + $0x1e4] sm:$0xf]
    %v193 = vld [vmem:[#allocation6 + $0x1e8] sm:$0xf]
    %v194 = vld [vmem:[#allocation6 + $0x1ec] sm:$0xf]
    %v195 = vld [vmem:[#allocation6 + $0x1f0] sm:$0xf]
    %v196 = vld [vmem:[#allocation6 + $0x1f4] sm:$0xf]
    %v197 = vld [vmem:[#allocation6 + $0x1f8] sm:$0xf]
    %v198 = vld [vmem:[#allocation6 + $0x1fc] sm:$0xf]
    %v327 = vunpack.c.l.b16 %v71
    %v328 = vunpack.c.l.b16 %v72
    %v329 = vunpack.c.l.b16 %v73
    %v330 = vunpack.c.l.b16 %v74
    %v331 = vunpack.c.l.b16 %v75
    %v332 = vunpack.c.l.b16 %v76
    %v333 = vunpack.c.l.b16 %v77
    %v334 = vunpack.c.l.b16 %v78
    %v335 = vunpack.c.l.b16 %v79
    %v336 = vunpack.c.l.b16 %v80
    %v337 = vunpack.c.l.b16 %v81
    %v338 = vunpack.c.l.b16 %v82
    %v339 = vunpack.c.l.b16 %v83
    %v340 = vunpack.c.l.b16 %v84
    %v341 = vunpack.c.l.b16 %v85
    %v342 = vunpack.c.l.b16 %v86
    %v343 = vunpack.c.l.b16 %v87
    %v344 = vunpack.c.l.b16 %v88
    %v345 = vunpack.c.l.b16 %v89
    %v346 = vunpack.c.l.b16 %v90
    %v347 = vunpack.c.l.b16 %v91
    %v348 = vunpack.c.l.b16 %v92
    %v349 = vunpack.c.l.b16 %v93
    %v350 = vunpack.c.l.b16 %v94
    %v351 = vunpack.c.l.b16 %v95
    %v352 = vunpack.c.l.b16 %v96
    %v353 = vunpack.c.l.b16 %v97
    %v354 = vunpack.c.l.b16 %v98
    %v355 = vunpack.c.l.b16 %v99
    %v356 = vunpack.c.l.b16 %v100
    %v357 = vunpack.c.l.b16 %v101
    %v358 = vunpack.c.l.b16 %v102
    %v359 = vunpack.c.l.b16 %v103
    %v360 = vunpack.c.l.b16 %v104
    %v361 = vunpack.c.l.b16 %v105
    %v362 = vunpack.c.l.b16 %v106
    %v363 = vunpack.c.l.b16 %v107
    %v364 = vunpack.c.l.b16 %v108
    %v365 = vunpack.c.l.b16 %v109
    %v366 = vunpack.c.l.b16 %v110
    %v367 = vunpack.c.l.b16 %v111
    %v368 = vunpack.c.l.b16 %v112
    %v369 = vunpack.c.l.b16 %v113
    %v370 = vunpack.c.l.b16 %v114
    %v371 = vunpack.c.l.b16 %v115
    %v372 = vunpack.c.l.b16 %v116
    %v373 = vunpack.c.l.b16 %v117
    %v374 = vunpack.c.l.b16 %v118
    %v375 = vunpack.c.l.b16 %v119
    %v376 = vunpack.c.l.b16 %v120
    %v377 = vunpack.c.l.b16 %v121
    %v378 = vunpack.c.l.b16 %v122
    %v379 = vunpack.c.l.b16 %v123
    %v380 = vunpack.c.l.b16 %v124
    %v381 = vunpack.c.l.b16 %v125
    %v382 = vunpack.c.l.b16 %v126
    %v383 = vunpack.c.l.b16 %v127
    %v384 = vunpack.c.l.b16 %v128
    %v385 = vunpack.c.l.b16 %v129
    %v386 = vunpack.c.l.b16 %v130
    %v387 = vunpack.c.l.b16 %v131
    %v388 = vunpack.c.l.b16 %v132
    %v389 = vunpack.c.l.b16 %v133
    %v390 = vunpack.c.l.b16 %v134
    %v391 = vunpack.c.l.b16 %v135
    %v392 = vunpack.c.l.b16 %v136
    %v393 = vunpack.c.l.b16 %v137
    %v394 = vunpack.c.l.b16 %v138
    %v395 = vunpack.c.l.b16 %v139
    %v396 = vunpack.c.l.b16 %v140
    %v397 = vunpack.c.l.b16 %v141
    %v398 = vunpack.c.l.b16 %v142
    %v399 = vunpack.c.l.b16 %v143
    %v400 = vunpack.c.l.b16 %v144
    %v401 = vunpack.c.l.b16 %v145
    %v402 = vunpack.c.l.b16 %v146
    %v403 = vunpack.c.l.b16 %v147
    %v404 = vunpack.c.l.b16 %v148
    %v405 = vunpack.c.l.b16 %v149
    %v406 = vunpack.c.l.b16 %v150
    %v407 = vunpack.c.l.b16 %v151
    %v408 = vunpack.c.l.b16 %v152
    %v409 = vunpack.c.l.b16 %v153
    %v410 = vunpack.c.l.b16 %v154
    %v411 = vunpack.c.l.b16 %v155
    %v412 = vunpack.c.l.b16 %v156
    %v413 = vunpack.c.l.b16 %v157
    %v414 = vunpack.c.l.b16 %v158
    %v415 = vunpack.c.l.b16 %v159
    %v416 = vunpack.c.l.b16 %v160
    %v417 = vunpack.c.l.b16 %v161
    %v418 = vunpack.c.l.b16 %v162
    %v419 = vunpack.c.l.b16 %v163
    %v420 = vunpack.c.l.b16 %v164
    %v421 = vunpack.c.l.b16 %v165
    %v422 = vunpack.c.l.b16 %v166
    %v423 = vunpack.c.l.b16 %v167
    %v424 = vunpack.c.l.b16 %v168
    %v425 = vunpack.c.l.b16 %v169
    %v426 = vunpack.c.l.b16 %v170
    %v427 = vunpack.c.l.b16 %v171
    %v428 = vunpack.c.l.b16 %v172
    %v429 = vunpack.c.l.b16 %v173
    %v430 = vunpack.c.l.b16 %v174
    %v431 = vunpack.c.l.b16 %v175
    %v432 = vunpack.c.l.b16 %v176
    %v433 = vunpack.c.l.b16 %v177
    %v434 = vunpack.c.l.b16 %v178
    %v435 = vunpack.c.l.b16 %v179
    %v436 = vunpack.c.l.b16 %v180
    %v437 = vunpack.c.l.b16 %v181
    %v438 = vunpack.c.l.b16 %v182
    %v439 = vunpack.c.l.b16 %v183
    %v440 = vunpack.c.l.b16 %v184
    %v441 = vunpack.c.l.b16 %v185
    %v442 = vunpack.c.l.b16 %v186
    %v443 = vunpack.c.l.b16 %v187
    %v444 = vunpack.c.l.b16 %v188
    %v445 = vunpack.c.l.b16 %v189
    %v446 = vunpack.c.l.b16 %v190
    %v447 = vunpack.c.l.b16 %v191
    %v448 = vunpack.c.l.b16 %v192
    %v449 = vunpack.c.l.b16 %v193
    %v450 = vunpack.c.l.b16 %v194
    %v451 = vunpack.c.l.b16 %v195
    %v452 = vunpack.c.l.b16 %v196
    %v453 = vunpack.c.l.b16 %v197
    %v454 = vunpack.c.l.b16 %v198
    %v455 = vpack.c.b16 %v328, %v327
    %v456 = vpack.c.b16 %v330, %v329
    %v457 = vpack.c.b16 %v332, %v331
    %v458 = vpack.c.b16 %v334, %v333
    %v459 = vpack.c.b16 %v336, %v335
    %v460 = vpack.c.b16 %v338, %v337
    %v461 = vpack.c.b16 %v340, %v339
    %v462 = vpack.c.b16 %v342, %v341
    %v463 = vpack.c.b16 %v344, %v343
    %v464 = vpack.c.b16 %v346, %v345
    %v465 = vpack.c.b16 %v348, %v347
    %v466 = vpack.c.b16 %v350, %v349
    %v467 = vpack.c.b16 %v352, %v351
    %v468 = vpack.c.b16 %v354, %v353
    %v469 = vpack.c.b16 %v356, %v355
    %v470 = vpack.c.b16 %v358, %v357
    %v471 = vpack.c.b16 %v360, %v359
    %v472 = vpack.c.b16 %v362, %v361
    %v473 = vpack.c.b16 %v364, %v363
    %v474 = vpack.c.b16 %v366, %v365
    %v475 = vpack.c.b16 %v368, %v367
    %v476 = vpack.c.b16 %v370, %v369
    %v477 = vpack.c.b16 %v372, %v371
    %v478 = vpack.c.b16 %v374, %v373
    %v479 = vpack.c.b16 %v376, %v375
    %v480 = vpack.c.b16 %v378, %v377
    %v481 = vpack.c.b16 %v380, %v379
    %v482 = vpack.c.b16 %v382, %v381
    %v483 = vpack.c.b16 %v384, %v383
    %v484 = vpack.c.b16 %v386, %v385
    %v485 = vpack.c.b16 %v388, %v387
    %v486 = vpack.c.b16 %v390, %v389
    %v487 = vpack.c.b16 %v392, %v391
    %v488 = vpack.c.b16 %v394, %v393
    %v489 = vpack.c.b16 %v396, %v395
    %v490 = vpack.c.b16 %v398, %v397
    %v491 = vpack.c.b16 %v400, %v399
    %v492 = vpack.c.b16 %v402, %v401
    %v493 = vpack.c.b16 %v404, %v403
    %v494 = vpack.c.b16 %v406, %v405
    %v495 = vpack.c.b16 %v408, %v407
    %v496 = vpack.c.b16 %v410, %v409
    %v497 = vpack.c.b16 %v412, %v411
    %v498 = vpack.c.b16 %v414, %v413
    %v499 = vpack.c.b16 %v416, %v415
    %v500 = vpack.c.b16 %v418, %v417
    %v501 = vpack.c.b16 %v420, %v419
    %v502 = vpack.c.b16 %v422, %v421
    %v503 = vpack.c.b16 %v424, %v423
    %v504 = vpack.c.b16 %v426, %v425
    %v505 = vpack.c.b16 %v428, %v427
    %v506 = vpack.c.b16 %v430, %v429
    %v507 = vpack.c.b16 %v432, %v431
    %v508 = vpack.c.b16 %v434, %v433
    %v509 = vpack.c.b16 %v436, %v435
    %v510 = vpack.c.b16 %v438, %v437
    %v511 = vpack.c.b16 %v440, %v439
    %v512 = vpack.c.b16 %v442, %v441
    %v513 = vpack.c.b16 %v444, %v443
    %v514 = vpack.c.b16 %v446, %v445
    %v515 = vpack.c.b16 %v448, %v447
    %v516 = vpack.c.b16 %v450, %v449
    %v517 = vpack.c.b16 %v452, %v451
    %v518 = vpack.c.b16 %v454, %v453
    %583 = vmatprep.subr.bf16.mxu0 0
    %584 = vmatpush1.bf16.msra.mxu0 %v462
    %585 = vmatprep.subr.bf16.mxu0 0
    %586 = vmatpush1.bf16.msra.mxu0 %v461
    %587 = vmatprep.subr.bf16.mxu0 0
    %588 = vmatpush1.bf16.msra.mxu0 %v460
    %589 = vmatprep.subr.bf16.mxu0 0
    %590 = vmatpush1.bf16.msra.mxu0 %v459
    %591 = vmatprep.subr.bf16.mxu0 0
    %592 = vmatpush1.bf16.msra.mxu0 %v458
    %593 = vmatprep.subr.bf16.mxu0 0
    %594 = vmatpush1.bf16.msra.mxu0 %v457
    %595 = vmatprep.subr.bf16.mxu0 0
    %596 = vmatpush1.bf16.msra.mxu0 %v456
    %597 = vmatprep.subr.bf16.mxu0 0
    %598 = vmatpush1.bf16.msra.mxu0 %v455
    %599 = vmatprep.subr.bf16.mxu0 0
    %600 = vmatpush2.bf16.msra.mxu0 %v470
    %601 = vmatprep.subr.bf16.mxu0 0
    %602 = vmatpush2.bf16.msra.mxu0 %v469
    %603 = vmatprep.subr.bf16.mxu0 0
    %604 = vmatpush2.bf16.msra.mxu0 %v468
    %605 = vmatprep.subr.bf16.mxu0 0
    %606 = vmatpush2.bf16.msra.mxu0 %v467
    %607 = vmatprep.subr.bf16.mxu0 0
    %608 = vmatpush2.bf16.msra.mxu0 %v466
    %609 = vmatprep.subr.bf16.mxu0 0
    %610 = vmatpush2.bf16.msra.mxu0 %v465
    %611 = vmatprep.subr.bf16.mxu0 0
    %612 = vmatpush2.bf16.msra.mxu0 %v464
    %613 = vmatprep.subr.bf16.mxu0 0
    %614 = vmatpush2.bf16.msra.mxu0 %v463
    %615 = vmatprep.mubr.bf16.mxu0 %v64
    %616 = vmatmul.mubr.bf16.gmra.mxu0 %v63
    %v617 = vpop.f32.mrf.mxu0
    %v618 = vadd.f32 0.0, %v617
    %v619 = vpop.f32.mrf.mxu0
    %v620 = vpop.f32.mrf.mxu0
    %v621 = vpop.f32.mrf.mxu0
    %622 = vdwg.mxu0
    %623 = vmatprep.subr.bf16.mxu0 0
    %624 = vmatpush1.bf16.msra.mxu0 %v478
    %625 = vmatprep.subr.bf16.mxu0 0
    %626 = vmatpush1.bf16.msra.mxu0 %v477
    %627 = vmatprep.subr.bf16.mxu0 0
    %628 = vmatpush1.bf16.msra.mxu0 %v476
    %629 = vmatprep.subr.bf16.mxu0 0
    %630 = vmatpush1.bf16.msra.mxu0 %v475
    %631 = vmatprep.subr.bf16.mxu0 0
    %632 = vmatpush1.bf16.msra.mxu0 %v474
    %633 = vmatprep.subr.bf16.mxu0 0
    %634 = vmatpush1.bf16.msra.mxu0 %v473
    %635 = vmatprep.subr.bf16.mxu0 0
    %636 = vmatpush1.bf16.msra.mxu0 %v472
    %637 = vmatprep.subr.bf16.mxu0 0
    %638 = vmatpush1.bf16.msra.mxu0 %v471
    %639 = vmatprep.subr.bf16.mxu0 0
    %640 = vmatpush2.bf16.msra.mxu0 %v486
    %641 = vmatprep.subr.bf16.mxu0 0
    %642 = vmatpush2.bf16.msra.mxu0 %v485
    %643 = vmatprep.subr.bf16.mxu0 0
    %644 = vmatpush2.bf16.msra.mxu0 %v484
    %645 = vmatprep.subr.bf16.mxu0 0
    %646 = vmatpush2.bf16.msra.mxu0 %v483
    %647 = vmatprep.subr.bf16.mxu0 0
    %648 = vmatpush2.bf16.msra.mxu0 %v482
    %649 = vmatprep.subr.bf16.mxu0 0
    %650 = vmatpush2.bf16.msra.mxu0 %v481
    %651 = vmatprep.subr.bf16.mxu0 0
    %652 = vmatpush2.bf16.msra.mxu0 %v480
    %653 = vmatprep.subr.bf16.mxu0 0
    %654 = vmatpush2.bf16.msra.mxu0 %v479
    %655 = vmatprep.mubr.bf16.mxu0 %v66
    %656 = vmatmul.mubr.bf16.gmra.mxu0 %v65
    %v657 = vpop.f32.mrf.mxu0
    %v658 = vadd.f32 %v618, %v657
    %v659 = vpop.f32.mrf.mxu0
    %v660 = vpop.f32.mrf.mxu0
    %v661 = vpop.f32.mrf.mxu0
    %662 = vdwg.mxu0
    %663 = vmatprep.subr.bf16.mxu0 0
    %664 = vmatpush1.bf16.msra.mxu0 %v494
    %665 = vmatprep.subr.bf16.mxu0 0
    %666 = vmatpush1.bf16.msra.mxu0 %v493
    %667 = vmatprep.subr.bf16.mxu0 0
    %668 = vmatpush1.bf16.msra.mxu0 %v492
    %669 = vmatprep.subr.bf16.mxu0 0
    %670 = vmatpush1.bf16.msra.mxu0 %v491
    %671 = vmatprep.subr.bf16.mxu0 0
    %672 = vmatpush1.bf16.msra.mxu0 %v490
    %673 = vmatprep.subr.bf16.mxu0 0
    %674 = vmatpush1.bf16.msra.mxu0 %v489
    %675 = vmatprep.subr.bf16.mxu0 0
    %676 = vmatpush1.bf16.msra.mxu0 %v488
    %677 = vmatprep.subr.bf16.mxu0 0
    %678 = vmatpush1.bf16.msra.mxu0 %v487
    %679 = vmatprep.subr.bf16.mxu0 0
    %680 = vmatpush2.bf16.msra.mxu0 %v502
    %681 = vmatprep.subr.bf16.mxu0 0
    %682 = vmatpush2.bf16.msra.mxu0 %v501
    %683 = vmatprep.subr.bf16.mxu0 0
    %684 = vmatpush2.bf16.msra.mxu0 %v500
    %685 = vmatprep.subr.bf16.mxu0 0
    %686 = vmatpush2.bf16.msra.mxu0 %v499
    %687 = vmatprep.subr.bf16.mxu0 0
    %688 = vmatpush2.bf16.msra.mxu0 %v498
    %689 = vmatprep.subr.bf16.mxu0 0
    %690 = vmatpush2.bf16.msra.mxu0 %v497
    %691 = vmatprep.subr.bf16.mxu0 0
    %692 = vmatpush2.bf16.msra.mxu0 %v496
    %693 = vmatprep.subr.bf16.mxu0 0
    %694 = vmatpush2.bf16.msra.mxu0 %v495
    %695 = vmatprep.mubr.bf16.mxu0 %v68
    %696 = vmatmul.mubr.bf16.gmra.mxu0 %v67
    %v697 = vpop.f32.mrf.mxu0
    %v698 = vadd.f32 %v658, %v697
    %v699 = vpop.f32.mrf.mxu0
    %v700 = vpop.f32.mrf.mxu0
    %v701 = vpop.f32.mrf.mxu0
    %702 = vdwg.mxu0
    %703 = vmatprep.subr.bf16.mxu0 0
    %704 = vmatpush1.bf16.msra.mxu0 %v510
    %705 = vmatprep.subr.bf16.mxu0 0
    %706 = vmatpush1.bf16.msra.mxu0 %v509
    %707 = vmatprep.subr.bf16.mxu0 0
    %708 = vmatpush1.bf16.msra.mxu0 %v508
    %709 = vmatprep.subr.bf16.mxu0 0
    %710 = vmatpush1.bf16.msra.mxu0 %v507
    %711 = vmatprep.subr.bf16.mxu0 0
    %712 = vmatpush1.bf16.msra.mxu0 %v506
    %713 = vmatprep.subr.bf16.mxu0 0
    %714 = vmatpush1.bf16.msra.mxu0 %v505
    %715 = vmatprep.subr.bf16.mxu0 0
    %716 = vmatpush1.bf16.msra.mxu0 %v504
    %717 = vmatprep.subr.bf16.mxu0 0
    %718 = vmatpush1.bf16.msra.mxu0 %v503
    %719 = vmatprep.subr.bf16.mxu0 0
    %720 = vmatpush2.bf16.msra.mxu0 %v518
    %721 = vmatprep.subr.bf16.mxu0 0
    %722 = vmatpush2.bf16.msra.mxu0 %v517
    %723 = vmatprep.subr.bf16.mxu0 0
    %724 = vmatpush2.bf16.msra.mxu0 %v516
    %725 = vmatprep.subr.bf16.mxu0 0
    %726 = vmatpush2.bf16.msra.mxu0 %v515
    %727 = vmatprep.subr.bf16.mxu0 0
    %728 = vmatpush2.bf16.msra.mxu0 %v514
    %729 = vmatprep.subr.bf16.mxu0 0
    %730 = vmatpush2.bf16.msra.mxu0 %v513
    %731 = vmatprep.subr.bf16.mxu0 0
    %732 = vmatpush2.bf16.msra.mxu0 %v512
    %733 = vmatprep.subr.bf16.mxu0 0
    %734 = vmatpush2.bf16.msra.mxu0 %v511
    %735 = vmatprep.mubr.bf16.mxu0 %v70
    %736 = vmatmul.mubr.bf16.gmra.mxu0 %v69
    %v737 = vpop.f32.mrf.mxu0
    %v738 = vadd.f32 %v698, %v737
    %v739 = vpop.f32.mrf.mxu0
    %v740 = vpop.f32.mrf.mxu0
    %v741 = vpop.f32.mrf.mxu0
    %742 = vdwg.mxu0
    %v743 = vadd.f32 %v62, %v738
    %744 = vst [vmem:[#allocation2] sm:$0xff] %v743
    // Predicated region
    $region30: #{tpu_custom_call.1} parent=1 // pred_check
      %p745 = pneg %p49
    $region31: #{tpu_custom_call.1} parent=1 // pred_check_branch
      %747 = sbr.rel (%p745) target = $region33
    $region32: #{tpu_custom_call.1} parent=1 // pred_region
      %v748 = vld [vmem:[#allocation2] sm:$0xff]
      %v749 = vld [vmem:[%s2] sm:$0x1]
      %v751 = vlaneseq
      %v752 = vshrl.u32 %v751, 7
      %v753 = vsub.s32 0, %v752
      %v754 = vrot.slane %v749, %v753
      %v756 = vadd.f32 %v748, %v754
      %757 = vst [vmem:[#allocation8] sm:$0xff] %v756
      %v758 = vlaneseq
      %v759 = vshrl.u32 %v758, 7
      %s760 = smul.u32 0, 8
      %v761 = vstv %s760
      %v762 = vadd.s32 %v759, %v761
      %vm763 = vcmp.lt.s32.totalorder %v762, 8
      %764 = vmax.xlane.f32.xlu0 %v756
      %v765 = vpop.xlane.xlu0 %764
      %v766 = vsub.f32 %v756, %v765
      %v767 = vmul.f32 %v766, 1.442695
      %v768 = vpow.pop %v767
      %769 = vadd.xlane.f32.xlu0 %v768
      %v770 = vpop.xlane.xlu0 %769
      %v771 = vrcp.pop %v770
      %v772 = vmul.f32 %v768, %v771
      %v773 = vlog2.pop %v770
      %v774 = vmul.f32 %v773, 0.6931472
      %v775 = vmul.f32 %v772, %v766
      %776 = vadd.xlane.f32.xlu0 %v775
      %v777 = vpop.xlane.xlu0 %776
      %v778 = vsub.f32 %v774, %v777
      %vm779 = vcmp.lt.f32.partialorder %v778, 2.4538777
      %vm780 = vmand %vm763, %vm779
      %v781 = vsel %vm780, 1.0, 0.0
      %vm782 = vcmask 7168
      %v783 = vsel %vm782, %v781, 0.0
      %784 = vadd.xlane.f32.xlu0 %v783
      %v785 = vpop.xlane.xlu0 %784
      %v786 = vrot.slane %v785, 4
      %v787 = vadd.f32 %v785, %v786
      %v788 = vrot.slane %v787, 2
      %v789 = vadd.f32 %v787, %v788
      %v790 = vrot.slane %v789, 1
      %v791 = vadd.f32 %v789, %v790
      %s792 = vtos %v791
      %v793 = vld [vmem:[%s3] sm:$0x1]
      %v795 = vlaneseq
      %v796 = vshrl.u32 %v795, 7
      %v797 = vsub.s32 0, %v796
      %v798 = vrot.slane %v793, %v797
      %v800 = vmul.f32 %v772, %v798
      %801 = vadd.xlane.f32.xlu0 %v800
      %v802 = vpop.xlane.xlu0 %801
      %v803 = vmul.f32 %v772, %v772
      %804 = vadd.xlane.f32.xlu0 %v803
      %v805 = vpop.xlane.xlu0 %804
      %v806 = vmax.f32 %v805, 1e-16
      %v807 = vrsqrt.pop %v806
      %v808 = vmul.f32 %v793, %v793
      %vm809 = vcmask 1040384
      %v810 = vsel %vm809, %v808, 0.0
      %811 = vadd.xlane.f32.xlu0 %v810
      %v812 = vpop.xlane.xlu0 %811
      %v813 = vmax.f32 %v812, 1e-16
      %v814 = vrsqrt.pop %v813
      %v815 = vmul.f32 %v802, %v807
      %v816 = vlaneseq
      %v817 = vshrl.u32 %v816, 7
      %v818 = vsub.s32 0, %v817
      %v819 = vrot.slane %v814, %v818
      %v820 = vmul.f32 %v815, %v819
      %v821 = vand.u32 2147483647, %v820
      %vm822 = vcmp.lt.f32.partialorder %v821, 0.05
      %vm823 = vmand %vm780, %vm822
      %v824 = vsel %vm823, 1.0, 0.0
      %v825 = vsel %vm782, %v824, 0.0
      %826 = vadd.xlane.f32.xlu0 %v825
      %v827 = vpop.xlane.xlu0 %826
      %v828 = vrot.slane %v827, 4
      %v829 = vadd.f32 %v827, %v828
      %v830 = vrot.slane %v829, 2
      %v831 = vadd.f32 %v829, %v830
      %v832 = vrot.slane %v831, 1
      %v833 = vadd.f32 %v831, %v832
      %s834 = vtos %v833
      %v835 = vsub.f32 2.4538777, %v778
      %v836 = vmul.f32 %v835, 1.442695
      %v837 = vpow.pop %v836
      %v838 = vmul.f32 %v778, %v837
      %v839 = vsel %vm823, %v838, 0.0
      %v840 = vsel %vm782, %v839, 0.0
      %841 = vadd.xlane.f32.xlu0 %v840
      %v842 = vpop.xlane.xlu0 %841
      %v843 = vrot.slane %v842, 4
      %v844 = vadd.f32 %v842, %v843
      %v845 = vrot.slane %v844, 2
      %v846 = vadd.f32 %v844, %v845
      %v847 = vrot.slane %v846, 1
      %v848 = vadd.f32 %v846, %v847
      %s849 = vtos %v848
      %v850 = vsel %vm823, 1, 0
      %vm851 = vcmp.eq.s32.totalorder %v850, 1
      %v852 = vsel %vm851, %v772, 0.0
      %v853 = vrot.slane %v852, 4
      %v854 = vadd.f32 %v852, %v853
      %v855 = vrot.slane %v854, 2
      %v856 = vadd.f32 %v854, %v855
      %v857 = vrot.slane %v856, 1
      %v858 = vadd.f32 %v856, %v857
      %859 = vst [vmem:[#allocation11] sm:$0x1] %v858
      %v860 = vlaneseq
      %v861 = vand.u32 %v860, 127
      %vm862 = vcmp.eq.s32.totalorder %v861, 0
      %vm863 = vcmp.eq.s32.totalorder %v861, 1
      %vm864 = vcmp.eq.s32.totalorder %v861, 2
      %v865 = vstv %s849
      %v866 = vsel %vm864, %v865, 0.0
      %v867 = vstv %s834
      %v868 = vsel %vm863, %v867, %v866
      %v869 = vstv %s792
      %v870 = vsel %vm862, %v869, %v868
      %871 = vst [vmem:[#allocation9] sm:$0x1] %v870
    $region33: #{tpu_custom_call.1} parent=1 // pred_fallthru
      _
    // Predicated region
    $region34: #{tpu_custom_call.1} parent=1 // pred_check
      _
    $region35: #{tpu_custom_call.1} parent=1 // pred_check_branch
      %873 = sbr.rel (0) target = $region37
    $region36: #{tpu_custom_call.1} parent=1 // pred_region
      %s875 = ssub.s32 128, 128
      %876 = vsyncadd [#allocation5], %s875
      %s878 = sshll.u32 [#allocation8], 4
      %s879 = int_to_ptr.vmem [resolvable:$true] %s878
      %881 = dma.vmem_to_hbm [thread:$0]  %s879, 128, %s4, [#allocation5]
    $region37: #{tpu_custom_call.1} parent=1 // pred_fallthru
      _
    // Predicated region
    $region38: #{tpu_custom_call.1} parent=1 // pred_check
      _
    $region39: #{tpu_custom_call.1} parent=1 // pred_check_branch
      %883 = sbr.rel (0) target = $region41
    $region40: #{tpu_custom_call.1} parent=1 // pred_region
      %s885 = ssub.s32 16, 16
      %886 = vsyncadd [#allocation10], %s885
      %s888 = sshll.u32 [#allocation9], 4
      %s889 = int_to_ptr.vmem [resolvable:$true] %s888
      %891 = dma.vmem_to_hbm [thread:$0]  %s889, 16, %s5, [#allocation10]
    $region41: #{tpu_custom_call.1} parent=1 // pred_fallthru
      _
    // Predicated region
    $region42: #{tpu_custom_call.1} parent=1 // pred_check
      _
    $region43: #{tpu_custom_call.1} parent=1 // pred_check_branch
      %893 = sbr.rel (0) target = $region45
    $region44: #{tpu_custom_call.1} parent=1 // pred_region
      %s895 = ssub.s32 16, 16
      %896 = vsyncadd [#allocation10], %s895
      %s898 = sshll.u32 [#allocation11], 4
      %s899 = int_to_ptr.vmem [resolvable:$true] %s898
      %901 = dma.vmem_to_hbm [thread:$0]  %s899, 16, %s6, [#allocation10]
    $region45: #{tpu_custom_call.1} parent=1 // pred_fallthru
      _
    // Predicated region
    $region46: #{tpu_custom_call.1} parent=1 // pred_check
      _
    $region47: #{tpu_custom_call.1} parent=1 // pred_check_branch
      %903 = sbr.rel (0) target = $region49
    $region48: #{tpu_custom_call.1} parent=1 // pred_region
      %904 = dma.done [#allocation5], 128
    $region49: #{tpu_custom_call.1} parent=1 // pred_fallthru
      _
    // Predicated region
    $region50: #{tpu_custom_call.1} parent=1 // pred_check
      _
    $region51: #{tpu_custom_call.1} parent=1 // pred_check_branch
      %906 = sbr.rel (0) target = $region53
    $region52: #{tpu_custom_call.1} parent=1 // pred_region
      %907 = dma.done [#allocation10], 16
    $region53: #{tpu_custom_call.1} parent=1 // pred_fallthru
      _
    // Predicated region
    $region54: #{tpu_custom_call.1} parent=1 // pred_check
      _
    $region55: #{tpu_custom_call.1} parent=1 // pred_check_branch
      %909 = sbr.rel (0) target = $region57
    $region56: #{tpu_custom_call.1} parent=1 // pred_region
      %910 = dma.done [#allocation10], 16
    $region57: #{tpu_custom_call.1} parent=1 // pred_fallthru
      _
    %911 = vsyncpa [#allocation4], 1
    %912 = vsyncpa [#allocation7], 1
    %913 = vsyncpa [#allocation5], 1
    %914 = vsyncpa [#allocation10], 1

</llo_original>
